<compile_context>
chip_gen: v5e
topology: v5e:2x2
jax: 0.10.0
libtpu: 0.0.40
codegen_flags: <defaults>
</compile_context>

<pallas_src>
import math

import jax
import jax.numpy as jnp
from jax.experimental import pallas as pl
from jax.experimental.pallas import tpu as pltpu


# ----------------------------------------------------------------------------
# Pallas kernel: flash-style QKV attention over (G, ch, T) channel-first tiles.
# ----------------------------------------------------------------------------
def _make_attn_kernel(scale_sq, matmul_dtype, approx_recip):
    def kernel(q_ref, k_ref, v_ref, o_ref, m_sc, l_sc, acc_sc):
        ki = pl.program_id(2)

        @pl.when(ki == 0)
        def _init():
            m_sc[...] = jnp.full(m_sc.shape, -jnp.inf, dtype=m_sc.dtype)
            l_sc[...] = jnp.zeros(l_sc.shape, dtype=l_sc.dtype)
            acc_sc[...] = jnp.zeros(acc_sc.shape, dtype=acc_sc.dtype)

        k = k_ref[...]                                        # (G, ch, tk)
        v = v_ref[...]                                        # (G, ch, tk)

        if matmul_dtype is None:
            # Semantics-preserving path: matmuls run in the input dtype, the
            # (q*scale)*(k*scale) factor folded once into q as scale^2.
            # (In the dominant KV-resident path there is a single ki step per
            # q-tile, so this multiply is not redone across kv steps.)
            q = q_ref[...] * jnp.asarray(scale_sq, q_ref.dtype)
            # s[g, u, t] = sum_c k[g, c, u] * q[g, c, t]  -> (G, tk, tq)
            s = jax.lax.dot_general(
                k, q,
                dimension_numbers=(((1,), (1,)), ((0,), (0,))),
                preferred_element_type=jnp.float32)
            p_dtype = v.dtype
        else:
            # Forced low-precision MXU path (perf review): cast the operands
            # only; apply the softmax scale to the f32 scores so the scale is
            # not rounded into the low-precision q.
            q = q_ref[...]
            s = jax.lax.dot_general(
                k.astype(matmul_dtype), q.astype(matmul_dtype),
                dimension_numbers=(((1,), (1,)), ((0,), (0,))),
                preferred_element_type=jnp.float32)
            s = s * jnp.float32(scale_sq)
            p_dtype = matmul_dtype

        # Online softmax.  Stats are kept lane-major (G, 1, tq) so the
        # accumulator stays channels-first / lane-dense and the final store
        # needs no transpose.
        m_prev = m_sc[...]                                    # (G, 1, tq)
        m_new = jnp.maximum(m_prev, jnp.max(s, axis=1, keepdims=True))
        alpha = jnp.exp(m_prev - m_new)                       # (G, 1, tq)
        p = jnp.exp(s - m_new)                                # (G, tk, tq) f32
        l_sc[...] = alpha * l_sc[...] + jnp.sum(p, axis=1, keepdims=True)

        # pv[g, c, t] = sum_u v[g, c, u] * p[g, u, t]  -> (G, ch, tq)
        # (canonical MXU orientation: lhs contracts its minor dim, rhs its
        # second-minor dim; result is already channels-first.)
        pv = jax.lax.dot_general(
            v if matmul_dtype is None else v.astype(matmul_dtype),
            p.astype(p_dtype),
            dimension_numbers=(((2,), (1,)), ((0,), (0,))),
            preferred_element_type=jnp.float32)
        acc_sc[...] = alpha * acc_sc[...] + pv
        m_sc[...] = m_new

        @pl.when(ki == pl.num_programs(2) - 1)
        def _finalize():
            # Normalize post-matmul; reciprocal goes to the EUP.  Approx mode
            # only when the output is already low precision (keeps f32 output
            # numerics reference-exact).
            inv_l = pl.reciprocal(l_sc[...], approx=approx_recip)
            o_ref[...] = (acc_sc[...] * inv_l).astype(o_ref.dtype)

    return kernel


def qkv_attention_legacy(qkv, n_heads, *, q_block=None, kv_block=None,
                         heads_per_block=None, matmul_dtype=None,
                         vmem_limit_bytes=None):
    """Pallas implementation of QKVAttentionLegacy.forward.

    qkv: [N, H*3*C, T]  ->  returns [N, H*C, T]
    """
    bs, width, length = qkv.shape
    assert width % (3 * n_heads) == 0
    ch = width // (3 * n_heads)
    B = bs * n_heads
    T = length
    dtype = qkv.dtype
    itemsize = jnp.dtype(dtype).itemsize

    # scale applied to q and k is ch**-0.25 each; fold into one ch**-0.5 factor.
    scale_sq = 1.0 / math.sqrt(ch)

    # --- generation-aware VMEM budgets ---------------------------------------
    try:
        info = pltpu.get_tpu_info()
        vmem_cap = getattr(info, "vmem_capacity_bytes", 64 * 1024 * 1024)
    except Exception:  # interpret mode / no TPU visible at trace time
        vmem_cap = 64 * 1024 * 1024
    if vmem_cap >= 96 * 1024 * 1024:
        # v5e / v6e: 128 MiB physical VMEM -> raise the scoped limit, big budget.
        auto_limit = 96 * 1024 * 1024
        budget = 64 * 1024 * 1024
    else:
        # v7x: 64 MiB per TensorCore -> ~44 MiB limit, leave headroom for
        # Mosaic internal scratch on top of the double-buffered tiles.
        auto_limit = min(44 * 1024 * 1024, (vmem_cap * 11) // 16)
        budget = max(16 * 1024 * 1024, auto_limit - 12 * 1024 * 1024)
    if vmem_limit_bytes is None:
        vmem_limit_bytes = auto_limit

    # --- pad head channels to a sublane multiple (keeps zero-copy index_maps) -
    ch_p = ch if ch % 8 == 0 else ((ch + 7) // 8) * 8
    qkv_r = qkv.reshape(B, 3, ch, T)                 # free reshape
    if ch_p != ch:
        # Zero-padded channels contribute nothing to QK^T and produce zero
        # output channels (sliced off below) -- one padded copy instead of the
        # old three materialized q/k/v slices.
        qkv_r = jnp.pad(qkv_r, ((0, 0), (0, 0), (0, ch_p - ch), (0, 0)))
    qkv_r = qkv_r.reshape(B, 3 * ch_p, T)

    # --- tile selection --------------------------------------------------------
    if q_block is not None:
        tq = q_block
    elif T % 128 != 0:
        # TODO(synk): very long T that is not a multiple of 128 still uses a
        # single (T, T) score tile; pad T to a multiple of 128 upstream for that.
        tq = T
    elif T % 256 == 0 and T >= 512:
        tq = 256
    else:
        tq = 128
    assert T % tq == 0

    def vmem_use(g, tk_):
        q_buf = 2 * g * ch_p * tq * itemsize                # dbl-buffered q
        kv_buf = 2 * 2 * g * ch_p * tk_ * itemsize          # dbl-buffered k, v
        out_buf = 2 * g * ch_p * tq * itemsize              # dbl-buffered out
        scratch = g * ch_p * tq * 4 + 2 * g * 8 * tq * 4    # acc + m/l (padded)
        interm = 3 * g * tk_ * tq * 4                       # s / p f32 temps
        return q_buf + kv_buf + out_buf + scratch + interm

    if kv_block is not None:
        tk = kv_block
    else:
        # Prefer the whole KV (tk == T) resident in VMEM: the K/V block index
        # is then constant across q-tiles, so Pallas DMAs K/V from HBM exactly
        # once per head group (dominant HBM-traffic win).  Fall back to flash
        # kv-tiling only when it doesn't fit the per-generation budget.
        tk_candidates = [T]
        if T % 128 == 0:
            tk_candidates += [c for c in (1024, 512, 256, 128)
                              if T % c == 0 and c < T]
        tk = next((c for c in tk_candidates if vmem_use(1, c) <= budget),
                  tk_candidates[-1])
    assert T % tk == 0

    if heads_per_block is not None:
        G = heads_per_block
    else:
        # Largest head group that fits the VMEM budget while keeping at least
        # two steps on the "parallel" grid axes (v7x has 2 TensorCores).
        min_par = B * (T // tq)
        G = 1
        for g in range(B, 0, -1):
            if B % g:
                continue
            par = (B // g) * (T // tq)
            if vmem_use(g, tk) <= budget and (par >= 2 or min_par < 2):
                G = g
                break
    assert B % G == 0

    grid = (B // G, T // tq, T // tk)

    # q/k/v read straight out of the fused (padded) qkv buffer by selecting
    # the channel block (0/1/2) in the index_map -- no materialized slices.
    q_spec = pl.BlockSpec((G, ch_p, tq), lambda b, qi, ki: (b, 0, qi))
    # TODO(synk): on v5e, if xprof shows exposed K/V DMA waits with kv-tiling,
    # add pipeline_mode=pl.Buffered(3) to k_spec/v_spec.
    k_spec = pl.BlockSpec((G, ch_p, tk), lambda b, qi, ki: (b, 1, ki))
    v_spec = pl.BlockSpec((G, ch_p, tk), lambda b, qi, ki: (b, 2, ki))
    out_spec = pl.BlockSpec((G, ch_p, tq), lambda b, qi, ki: (b, 0, qi))

    kv_reread = 1 if tk == T else (T // tq)
    cost = pl.CostEstimate(
        flops=4 * B * ch_p * T * T,                    # QK^T + PV matmuls
        transcendentals=B * T * T,                     # exp
        bytes_accessed=B * ch_p * T * (2 + 2 * kv_reread) * itemsize)

    out = pl.pallas_call(
        _make_attn_kernel(scale_sq, matmul_dtype, itemsize < 4),
        out_shape=jax.ShapeDtypeStruct((B, ch_p, T), dtype),
        grid_spec=pltpu.PrefetchScalarGridSpec(
            num_scalar_prefetch=0,
            grid=grid,
            in_specs=[q_spec, k_spec, v_spec],
            out_specs=out_spec,
            scratch_shapes=[
                pltpu.VMEM((G, 1, tq), jnp.float32),     # running max  m
                pltpu.VMEM((G, 1, tq), jnp.float32),     # running sum  l
                pltpu.VMEM((G, ch_p, tq), jnp.float32),  # running acc (ch-first)
            ]),
        compiler_params=pltpu.CompilerParams(
            dimension_semantics=("parallel", "parallel", "arbitrary"),
            vmem_limit_bytes=vmem_limit_bytes),
        cost_estimate=cost,
    )(qkv_r, qkv_r, qkv_r)

    if ch_p != ch:
        out = out[:, :ch, :]
    return out.reshape(bs, n_heads * ch, T)


# ----------------------------------------------------------------------------
# Plain-JAX glue for the rest of AttentionBlock (GroupNorm, 1x1 convs, residual)
# ----------------------------------------------------------------------------
def group_norm(x, num_groups, weight, bias, eps=1e-5):
    # x: (N, C, T), matches torch.nn.GroupNorm (population variance).
    n, c, t = x.shape
    xg = x.reshape(n, num_groups, c // num_groups, t)
    mean = xg.mean(axis=(2, 3), keepdims=True)
    var = xg.var(axis=(2, 3), keepdims=True)
    xg = (xg - mean) / jnp.sqrt(var + eps)
    x = xg.reshape(n, c, t)
    return x * weight[None, :, None] + bias[None, :, None]


def conv1x1(x, w, b):
    # x: (N, C_in, T), w: (C_out, C_in), b: (C_out,) -- nn.Conv1d(kernel_size=1)
    return jnp.einsum('oc,nct->not', w, x) + b[None, :, None]


def init_attention_block_params(key, channels):
    k1, k2 = jax.random.split(key)
    bound = 1.0 / math.sqrt(channels)
    return dict(
        norm_w=jnp.ones((channels,), jnp.float32),
        norm_b=jnp.zeros((channels,), jnp.float32),
        qkv_w=jax.random.uniform(k1, (3 * channels, channels), jnp.float32, -bound, bound),
        qkv_b=jax.random.uniform(k2, (3 * channels,), jnp.float32, -bound, bound),
        # zero_module(proj_out): all proj parameters zeroed, as in the PyTorch code.
        proj_w=jnp.zeros((channels, channels), jnp.float32),
        proj_b=jnp.zeros((channels,), jnp.float32),
    )


def attention_block_forward(x, params, num_heads):
    # TODO(synk): torch.utils.checkpoint (use_checkpoint=True) is a training-time
    # rematerialization feature; wrap this function in jax.checkpoint if needed.
    b, c = x.shape[0], x.shape[1]
    spatial = x.shape[2:]
    xf = x.reshape(b, c, -1)
    h = group_norm(xf, min(32, c), params['norm_w'], params['norm_b'])
    qkv = conv1x1(h, params['qkv_w'], params['qkv_b'])
    h = qkv_attention_legacy(qkv, num_heads)
    h = conv1x1(h, params['proj_w'], params['proj_b'])
    return (xf + h).reshape(b, c, *spatial)


# ----------------------------------------------------------------------------
# Pure-JAX reference mirroring the PyTorch QKVAttentionLegacy
# ----------------------------------------------------------------------------
def _attention_reference(qkv, n_heads):
    bs, width, length = qkv.shape
    ch = width // (3 * n_heads)
    B = bs * n_heads
    qkv_r = qkv.reshape(B, 3 * ch, length)
    q, k, v = qkv_r[:, :ch], qkv_r[:, ch:2 * ch], qkv_r[:, 2 * ch:]
    scale = 1.0 / math.sqrt(math.sqrt(ch))
    w = jnp.einsum('bct,bcs->bts', (q * scale).astype(jnp.float32),
                   (k * scale).astype(jnp.float32))
    w = jax.nn.softmax(w, axis=-1)
    a = jnp.einsum('bts,bcs->bct', w, v.astype(jnp.float32))
    return a.reshape(bs, -1, length).astype(qkv.dtype)


if __name__ == "__main__":
    key = jax.random.PRNGKey(0)
    k1, k2, k3, k4, k5 = jax.random.split(key, 5)

    # 1) Attention kernel, single-tile path (bs=2, heads=2, ch=8, T=16).
    n_heads, bs, ch, T = 2, 2, 8, 16
    width = n_heads * 3 * ch
    qkv = jax.random.normal(k1, (bs, width, T), dtype=jnp.float32)
    out = jax.block_until_ready(qkv_attention_legacy(qkv, n_heads))
    ref = _attention_reference(qkv, n_heads)
    assert out.shape == (bs, n_heads * ch, T)
    assert jnp.allclose(out, ref, atol=1e-5, rtol=1e-5)

    # 2) Attention kernel, forced flash tiling (multiple q/kv tiles, online softmax).
    T2 = 256
    qkv2 = jax.random.normal(k2, (1, width, T2), dtype=jnp.float32)
    ref2 = _attention_reference(qkv2, n_heads)
    out2 = jax.block_until_ready(
        qkv_attention_legacy(qkv2, n_heads, q_block=128, kv_block=128,
                             heads_per_block=1))
    assert jnp.allclose(out2, ref2, atol=1e-5, rtol=1e-5)

    # 2b) Auto path on the same data (KV-resident: tk == T, q-tiled).
    out2b = jax.block_until_ready(qkv_attention_legacy(qkv2, n_heads))
    assert jnp.allclose(out2b, ref2, atol=1e-5, rtol=1e-5)

    # 2c) Forced bf16 MXU path (scale applied to f32 scores), loose tolerance.
    out2c = jax.block_until_ready(
        qkv_attention_legacy(qkv2, n_heads, matmul_dtype=jnp.bfloat16))
    assert jnp.allclose(out2c, ref2, atol=5e-2, rtol=5e-2)

    # 2d) Head-channel padding path (ch=4, not a multiple of 8).
    qkv3 = jax.random.normal(k5, (2, 2 * 3 * 4, 16), dtype=jnp.float32)
    out3 = jax.block_until_ready(qkv_attention_legacy(qkv3, 2))
    ref3 = _attention_reference(qkv3, 2)
    assert jnp.allclose(out3, ref3, atol=1e-5, rtol=1e-5)

    # 3) Full AttentionBlock forward: x [2, 16, 4, 4], channels=16, num_heads=2.
    channels, num_heads = 16, 2
    x = jax.random.normal(k3, (2, channels, 4, 4), dtype=jnp.float32)
    params = init_attention_block_params(k4, channels)
    y = jax.block_until_ready(attention_block_forward(x, params, num_heads))
    assert y.shape == x.shape
    # proj_out is zero-initialized (zero_module), so the block is the identity.
    assert jnp.allclose(y, x, atol=1e-5, rtol=1e-5)

    print("KERNEL_OK")
</pallas_src>

<mosaic_0001>
module attributes {stable_mosaic.version = 11 : i64} {
  func.func @kernel(%arg0: i32, %arg1: i32, %arg2: i32, %arg3: memref<2x8x16xf32, #tpu.memory_space<vmem>>, %arg4: memref<2x8x16xf32, #tpu.memory_space<vmem>>, %arg5: memref<2x8x16xf32, #tpu.memory_space<vmem>>, %arg6: memref<2x8x16xf32, #tpu.memory_space<vmem>>, %arg7: memref<2x1x16xf32, #tpu.memory_space<vmem>>, %arg8: memref<2x1x16xf32, #tpu.memory_space<vmem>>, %arg9: memref<2x8x16xf32, #tpu.memory_space<vmem>>) attributes {dimension_semantics = [#tpu.dimension_semantics<parallel>, #tpu.dimension_semantics<parallel>, #tpu.dimension_semantics<arbitrary>], iteration_bounds = array<i64: 2, 1, 1>, scalar_prefetch = 0 : i64, scratch_operands = 3 : i64, tpu.core_type = #tpu.core_type<tc>, window_params = [{transform_indices = @transform_0, window_bounds = array<i64: 2, 8, 16>}, {transform_indices = @transform_1, window_bounds = array<i64: 2, 8, 16>}, {transform_indices = @transform_2, window_bounds = array<i64: 2, 8, 16>}, {transform_indices = @transform_3, window_bounds = array<i64: 2, 8, 16>}]} {
    %c0_i32 = arith.constant 0 : i32
    %0 = arith.cmpi eq, %arg2, %c0_i32 : i32
    %1 = arith.extui %0 : i1 to i32
    %c0_i32_0 = arith.constant 0 : i32
    %2 = arith.cmpi ne, %1, %c0_i32_0 : i32
    scf.if %2 {
      %cst_33 = arith.constant 0xFF800000 : f32
      %34 = vector.broadcast %cst_33 : f32 to vector<2x1x16xf32>
      %c0_34 = arith.constant 0 : index
      %c0_35 = arith.constant 0 : index
      %c0_36 = arith.constant 0 : index
      %35 = vector.load %arg7[%c0_34, %c0_35, %c0_36] : memref<2x1x16xf32, #tpu.memory_space<vmem>>, vector<2x1x16xf32>
      tpu.vector_store %arg7[%c0_34, %c0_35, %c0_36], %34 {strides = array<i32>} : memref<2x1x16xf32, #tpu.memory_space<vmem>>, vector<2x1x16xf32>,
      %cst_37 = arith.constant 0.000000e+00 : f32
      %36 = vector.broadcast %cst_37 : f32 to vector<2x1x16xf32>
      %c0_38 = arith.constant 0 : index
      %c0_39 = arith.constant 0 : index
      %c0_40 = arith.constant 0 : index
      %37 = vector.load %arg8[%c0_38, %c0_39, %c0_40] : memref<2x1x16xf32, #tpu.memory_space<vmem>>, vector<2x1x16xf32>
      tpu.vector_store %arg8[%c0_38, %c0_39, %c0_40], %36 {strides = array<i32>} : memref<2x1x16xf32, #tpu.memory_space<vmem>>, vector<2x1x16xf32>,
      %cst_41 = arith.constant 0.000000e+00 : f32
      %38 = vector.broadcast %cst_41 : f32 to vector<2x8x16xf32>
      %c0_42 = arith.constant 0 : index
      %c0_43 = arith.constant 0 : index
      %c0_44 = arith.constant 0 : index
      %39 = vector.load %arg9[%c0_42, %c0_43, %c0_44] : memref<2x8x16xf32, #tpu.memory_space<vmem>>, vector<2x8x16xf32>
      tpu.vector_store %arg9[%c0_42, %c0_43, %c0_44], %38 {strides = array<i32>} : memref<2x8x16xf32, #tpu.memory_space<vmem>>, vector<2x8x16xf32>,
    } else {
    }
    %c0 = arith.constant 0 : index
    %c0_1 = arith.constant 0 : index
    %c0_2 = arith.constant 0 : index
    %3 = vector.load %arg4[%c0, %c0_1, %c0_2] : memref<2x8x16xf32, #tpu.memory_space<vmem>>, vector<2x8x16xf32>
    %c0_3 = arith.constant 0 : index
    %c0_4 = arith.constant 0 : index
    %c0_5 = arith.constant 0 : index
    %4 = vector.load %arg5[%c0_3, %c0_4, %c0_5] : memref<2x8x16xf32, #tpu.memory_space<vmem>>, vector<2x8x16xf32>
    %c0_6 = arith.constant 0 : index
    %c0_7 = arith.constant 0 : index
    %c0_8 = arith.constant 0 : index
    %5 = vector.load %arg3[%c0_6, %c0_7, %c0_8] : memref<2x8x16xf32, #tpu.memory_space<vmem>>, vector<2x8x16xf32>
    %cst = arith.constant 0.353553385 : f32
    %6 = vector.broadcast %cst : f32 to vector<2x8x16xf32>
    %7 = arith.mulf %5, %6 : vector<2x8x16xf32>
    %cst_9 = arith.constant dense<0.000000e+00> : vector<2x16x16xf32>
    %8 = tpu.matmul %3, %7, %cst_9 {dimension_numbers = #tpu.dot_dimension_numbers<[1], [1], [2], [2], [0, 0, 0, 2, 1, 2], [0], [0]>} : vector<2x8x16xf32>, vector<2x8x16xf32>, vector<2x16x16xf32> -> vector<2x16x16xf32>
    %c0_10 = arith.constant 0 : index
    %c0_11 = arith.constant 0 : index
    %c0_12 = arith.constant 0 : index
    %9 = vector.load %arg7[%c0_10, %c0_11, %c0_12] : memref<2x1x16xf32, #tpu.memory_space<vmem>>, vector<2x1x16xf32>
    %cst_13 = arith.constant dense<0xFF800000> : vector<2x16xf32>
    %10 = vector.multi_reduction <maximumf>, %8, %cst_13 [1] : vector<2x16x16xf32> to vector<2x16xf32>
    %11 = vector.shape_cast %10 : vector<2x16xf32> to vector<2x1x16xf32>
    %12 = arith.maximumf %9, %11 : vector<2x1x16xf32>
    %13 = arith.subf %9, %12 : vector<2x1x16xf32>
    %14 = math.exp %13 : vector<2x1x16xf32>
    %15 = vector.broadcast %12 : vector<2x1x16xf32> to vector<2x16x16xf32>
    %16 = arith.subf %8, %15 : vector<2x16x16xf32>
    %17 = math.exp %16 : vector<2x16x16xf32>
    %c0_14 = arith.constant 0 : index
    %c0_15 = arith.constant 0 : index
    %c0_16 = arith.constant 0 : index
    %18 = vector.load %arg8[%c0_14, %c0_15, %c0_16] : memref<2x1x16xf32, #tpu.memory_space<vmem>>, vector<2x1x16xf32>
    %19 = arith.mulf %14, %18 : vector<2x1x16xf32>
    %cst_17 = arith.constant dense<0.000000e+00> : vector<2x16xf32>
    %20 = vector.multi_reduction <add>, %17, %cst_17 [1] : vector<2x16x16xf32> to vector<2x16xf32>
    %21 = vector.shape_cast %20 : vector<2x16xf32> to vector<2x1x16xf32>
    %22 = arith.addf %19, %21 : vector<2x1x16xf32>
    %c0_18 = arith.constant 0 : index
    %c0_19 = arith.constant 0 : index
    %c0_20 = arith.constant 0 : index
    %23 = vector.load %arg8[%c0_18, %c0_19, %c0_20] : memref<2x1x16xf32, #tpu.memory_space<vmem>>, vector<2x1x16xf32>
    tpu.vector_store %arg8[%c0_18, %c0_19, %c0_20], %22 {strides = array<i32>} : memref<2x1x16xf32, #tpu.memory_space<vmem>>, vector<2x1x16xf32>,
    %cst_21 = arith.constant dense<0.000000e+00> : vector<2x8x16xf32>
    %24 = tpu.matmul %4, %17, %cst_21 {dimension_numbers = #tpu.dot_dimension_numbers<[2], [1], [1], [2], [0, 0, 0, 1, 1, 2], [0], [0]>} : vector<2x8x16xf32>, vector<2x16x16xf32>, vector<2x8x16xf32> -> vector<2x8x16xf32>
    %c0_22 = arith.constant 0 : index
    %c0_23 = arith.constant 0 : index
    %c0_24 = arith.constant 0 : index
    %25 = vector.load %arg9[%c0_22, %c0_23, %c0_24] : memref<2x8x16xf32, #tpu.memory_space<vmem>>, vector<2x8x16xf32>
    %26 = vector.broadcast %14 : vector<2x1x16xf32> to vector<2x8x16xf32>
    %27 = arith.mulf %26, %25 : vector<2x8x16xf32>
    %28 = arith.addf %27, %24 : vector<2x8x16xf32>
    %c0_25 = arith.constant 0 : index
    %c0_26 = arith.constant 0 : index
    %c0_27 = arith.constant 0 : index
    %29 = vector.load %arg9[%c0_25, %c0_26, %c0_27] : memref<2x8x16xf32, #tpu.memory_space<vmem>>, vector<2x8x16xf32>
    tpu.vector_store %arg9[%c0_25, %c0_26, %c0_27], %28 {strides = array<i32>} : memref<2x8x16xf32, #tpu.memory_space<vmem>>, vector<2x8x16xf32>,
    %c0_28 = arith.constant 0 : index
    %c0_29 = arith.constant 0 : index
    %c0_30 = arith.constant 0 : index
    %30 = vector.load %arg7[%c0_28, %c0_29, %c0_30] : memref<2x1x16xf32, #tpu.memory_space<vmem>>, vector<2x1x16xf32>
    tpu.vector_store %arg7[%c0_28, %c0_29, %c0_30], %12 {strides = array<i32>} : memref<2x1x16xf32, #tpu.memory_space<vmem>>, vector<2x1x16xf32>,
    %c0_i32_31 = arith.constant 0 : i32
    %31 = arith.cmpi eq, %arg2, %c0_i32_31 : i32
    %32 = arith.extui %31 : i1 to i32
    %c0_i32_32 = arith.constant 0 : i32
    %33 = arith.cmpi ne, %32, %c0_i32_32 : i32
    scf.if %33 {
      %c0_33 = arith.constant 0 : index
      %c0_34 = arith.constant 0 : index
      %c0_35 = arith.constant 0 : index
      %34 = vector.load %arg8[%c0_33, %c0_34, %c0_35] : memref<2x1x16xf32, #tpu.memory_space<vmem>>, vector<2x1x16xf32>
      %35 = tpu.reciprocal %34 : vector<2x1x16xf32> -> vector<2x1x16xf32>
      %c0_36 = arith.constant 0 : index
      %c0_37 = arith.constant 0 : index
      %c0_38 = arith.constant 0 : index
      %36 = vector.load %arg9[%c0_36, %c0_37, %c0_38] : memref<2x8x16xf32, #tpu.memory_space<vmem>>, vector<2x8x16xf32>
      %37 = vector.broadcast %35 : vector<2x1x16xf32> to vector<2x8x16xf32>
      %38 = arith.mulf %36, %37 : vector<2x8x16xf32>
      %c0_39 = arith.constant 0 : index
      %c0_40 = arith.constant 0 : index
      %c0_41 = arith.constant 0 : index
      %39 = vector.load %arg6[%c0_39, %c0_40, %c0_41] : memref<2x8x16xf32, #tpu.memory_space<vmem>>, vector<2x8x16xf32>
      tpu.vector_store %arg6[%c0_39, %c0_40, %c0_41], %38 {strides = array<i32>} : memref<2x8x16xf32, #tpu.memory_space<vmem>>, vector<2x8x16xf32>,
    } else {
    }
    return
  }
  func.func @transform_0(%arg0: i32, %arg1: i32, %arg2: i32) -> (i32, i32, i32) {
    %c0_i32 = arith.constant 0 : i32
    %c0_i32_0 = arith.constant 0 : i32
    return %arg0, %c0_i32, %arg1 : i32, i32, i32
  }
  func.func @transform_1(%arg0: i32, %arg1: i32, %arg2: i32) -> (i32, i32, i32) {
    %c1_i32 = arith.constant 1 : i32
    %c0_i32 = arith.constant 0 : i32
    return %arg0, %c1_i32, %arg2 : i32, i32, i32
  }
  func.func @transform_2(%arg0: i32, %arg1: i32, %arg2: i32) -> (i32, i32, i32) {
    %c2_i32 = arith.constant 2 : i32
    %c0_i32 = arith.constant 0 : i32
    return %arg0, %c2_i32, %arg2 : i32, i32, i32
  }
  func.func @transform_3(%arg0: i32, %arg1: i32, %arg2: i32) -> (i32, i32, i32) {
    %c0_i32 = arith.constant 0 : i32
    %c0_i32_0 = arith.constant 0 : i32
    return %arg0, %c0_i32, %arg1 : i32, i32, i32
  }
}

</mosaic_0001>

<llo_original>
// kernel: tpu_custom_call.1
$region0: #{tpu_custom_call.1}
  #allocation0 [shape = 'u32[]', space=smem, size = 0x4, offset = 0x4, fixed_abs, tag = 'smem constant byte address 0x4 - core index']
  #allocation1 [shape = 'u32[72,128]{1,0:T(1,128)}', space=vmem, size = 0x9000, scoped, tag = 'internal scratch']
  #allocation2 [shape = 'f32[2,1,16]{2,1,0:T(1,128)}', space=vmem, size = 0x400, scoped, tag = 'scratch operand']
  #allocation3 [shape = 'f32[2,1,16]{2,1,0:T(1,128)}', space=vmem, size = 0x400, scoped, tag = 'scratch operand']
  #allocation4 [shape = 'f32[2,8,16]{2,1,0:T(8,128)}', space=vmem, size = 0x2000, scoped, tag = 'scratch operand']
  %s0 = inlined_call_operand.vmem [shape: f32[4,24,16], index: 0, kind: input, shape index: {}]
  %s1 = inlined_call_operand.vmem [shape: f32[4,24,16], index: 1, kind: input, shape index: {}]
  %s2 = inlined_call_operand.vmem [shape: f32[4,24,16], index: 2, kind: input, shape index: {}]
  %s3 = inlined_call_operand.hbm [shape: f32[4,8,16], index: 3, kind: output, shape index: {}]
  %s4 = sld [smem:[#allocation0]]
  $region167: #{tpu_custom_call.1} parent=0
    _
  %s6 = ssub.s32 1, %s4
  %s7 = scalar_select 0, %s6, %s4
  $region1: #{tpu_custom_call.1} parent=0
    #allocation5 [shape = 'u8[16384]{0}', space=vmem, size = 0x4000, scoped, tag = 'input window, operand 0']
    #allocation6 [shape = 'u8[16384]{0}', space=vmem, size = 0x4000, scoped, tag = 'input window, operand 1']
    #allocation7 [shape = 'u8[16384]{0}', space=vmem, size = 0x4000, scoped, tag = 'input window, operand 2']
    #allocation8 [shape = 'u8[16384]{0}', space=vmem, size = 0x4000, scoped, tag = 'output window, operand 0']
    #allocation9 [shape = 's32[2]{0}', space=sflag, size = 0x8, scoped, tag = 'scoped memory for tpu_custom_call.1']
    %8 = vsyncpa [#allocation9], 0
    %s9 = scalar_lea.sflag [#allocation9], 1
    %10 = vsyncpa %s9, 0
    loop: start=0, step=1, limit=4
    $region2: #{tpu_custom_call.1} parent=1 // loop_pre_header
      _
    $region3: #{tpu_custom_call.1} parent=1 // loop_header
      %s12 = sphi 0, %s16
      %p13 = scmp.ge.s32.totalorder %s12, 4
      %s19 = sphi 0, %s38
      %s20 = sphi 0, %s34
      %s21 = sphi 0, %s30
      %s22 = sphi 0, %s19
      %s23 = sphi 0, %s20
      %s24 = sphi 0, %s21
      %s25 = sphi 0, %s22
      %s26 = sphi 0, %s23
      %s27 = sphi 0, %s24
      %s43 = sphi 0, %s45
      %s46 = sphi 0, %s43
      %s47 = sphi 0, %s46
      %s63 = sphi 0, %s47
      %s71 = sphi 0, %s73
      %s74 = sphi 0, %s71
      %s75 = sphi 0, %s74
      %s91 = sphi 0, %s75
      %s99 = sphi 0, %s101
      %s102 = sphi 0, %s99
      %s103 = sphi 0, %s102
      %s119 = sphi 0, %s103
      %s127 = sphi 0, %s129
      %s130 = sphi 0, %s127
      %s131 = sphi 0, %s130
      %s147 = sphi 0, %s131
    $region4: #{tpu_custom_call.1} parent=1 // loop_header_branch
      %15 = sbr.rel (%p13) target = $region8
    $region5: #{tpu_custom_call.1} parent=1 // loop_body
      %s17 = ssub.s32 %s12, 1
      %s18 = ssub.s32 %s12, 2
      %s28 = sadd.s32 1, %s21
      %p29 = scmp.ge.s32.totalorder %s28, 1
      %s30 = scalar_select %p29, 0, %s28
      %s31 = sadd.s32 1, %s20
      %s32 = scalar_select %p29, %s31, %s20
      %p33 = scmp.ge.s32.totalorder %s32, 1
      %s34 = scalar_select %p33, 0, %s32
      %s35 = sadd.s32 1, %s19
      %s36 = scalar_select %p33, %s35, %s19
      %p37 = scmp.ge.s32.totalorder %s36, 2
      %s38 = scalar_select %p37, 0, %s36
      %s39 = ssub.s32 %s19, %s38
      %s40 = ssub.s32 %s20, %s34
      %s41 = sor.u32 %s39, %s40
      %p42 = scmp.eq.s32.totalorder %s41, 0
      %s44 = sadd.s32 %s43, 1
      %s45 = scalar_select %p42, %s43, %s44
      %p48 = pneg %p42
      %p49 = scmp.eq.s32.totalorder %s12, 1
      %p50 = por %p48, %p49
      %p51 = scmp.ne.s32.totalorder %s43, %s46
      %p52 = scmp.eq.s32.totalorder %s12, 0
      %p53 = por %p51, %p52
      %p54 = scmp.ne.s32.totalorder %s43, %s46
      %p55 = scmp.eq.s32.totalorder %s17, 1
      %p56 = por %p54, %p55
      %p57 = scmp.ne.s32.totalorder %s46, %s47
      %p58 = scmp.eq.s32.totalorder %s17, 0
      %p59 = por %p57, %p58
      %p60 = scmp.ne.s32.totalorder %s46, %s47
      %p61 = scmp.eq.s32.totalorder %s18, 1
      %p62 = por %p60, %p61
      %p64 = scmp.ne.s32.totalorder %s47, %s63
      %p65 = scmp.eq.s32.totalorder %s18, 0
      %p66 = por %p64, %p65
      %s67 = ssub.s32 %s19, %s38
      %s68 = ssub.s32 %s21, %s30
      %s69 = sor.u32 %s67, %s68
      %p70 = scmp.eq.s32.totalorder %s69, 0
      %s72 = sadd.s32 %s71, 1
      %s73 = scalar_select %p70, %s71, %s72
      %p76 = pneg %p70
      %p77 = scmp.eq.s32.totalorder %s12, 1
      %p78 = por %p76, %p77
      %p79 = scmp.ne.s32.totalorder %s71, %s74
      %p80 = scmp.eq.s32.totalorder %s12, 0
      %p81 = por %p79, %p80
      %p82 = scmp.ne.s32.totalorder %s71, %s74
      %p83 = scmp.eq.s32.totalorder %s17, 1
      %p84 = por %p82, %p83
      %p85 = scmp.ne.s32.totalorder %s74, %s75
      %p86 = scmp.eq.s32.totalorder %s17, 0
      %p87 = por %p85, %p86
      %p88 = scmp.ne.s32.totalorder %s74, %s75
      %p89 = scmp.eq.s32.totalorder %s18, 1
      %p90 = por %p88, %p89
      %p92 = scmp.ne.s32.totalorder %s75, %s91
      %p93 = scmp.eq.s32.totalorder %s18, 0
      %p94 = por %p92, %p93
      %s95 = ssub.s32 %s19, %s38
      %s96 = ssub.s32 %s21, %s30
      %s97 = sor.u32 %s95, %s96
      %p98 = scmp.eq.s32.totalorder %s97, 0
      %s100 = sadd.s32 %s99, 1
      %s101 = scalar_select %p98, %s99, %s100
      %p104 = pneg %p98
      %p105 = scmp.eq.s32.totalorder %s12, 1
      %p106 = por %p104, %p105
      %p107 = scmp.ne.s32.totalorder %s99, %s102
      %p108 = scmp.eq.s32.totalorder %s12, 0
      %p109 = por %p107, %p108
      %p110 = scmp.ne.s32.totalorder %s99, %s102
      %p111 = scmp.eq.s32.totalorder %s17, 1
      %p112 = por %p110, %p111
      %p113 = scmp.ne.s32.totalorder %s102, %s103
      %p114 = scmp.eq.s32.totalorder %s17, 0
      %p115 = por %p113, %p114
      %p116 = scmp.ne.s32.totalorder %s102, %s103
      %p117 = scmp.eq.s32.totalorder %s18, 1
      %p118 = por %p116, %p117
      %p120 = scmp.ne.s32.totalorder %s103, %s119
      %p121 = scmp.eq.s32.totalorder %s18, 0
      %p122 = por %p120, %p121
      %s123 = ssub.s32 %s19, %s38
      %s124 = ssub.s32 %s20, %s34
      %s125 = sor.u32 %s123, %s124
      %p126 = scmp.eq.s32.totalorder %s125, 0
      %s128 = sadd.s32 %s127, 1
      %s129 = scalar_select %p126, %s127, %s128
      %p132 = pneg %p126
      %p133 = scmp.eq.s32.totalorder %s12, 1
      %p134 = por %p132, %p133
      %p135 = scmp.ne.s32.totalorder %s127, %s130
      %p136 = scmp.eq.s32.totalorder %s12, 0
      %p137 = por %p135, %p136
      %p138 = scmp.ne.s32.totalorder %s127, %s130
      %p139 = scmp.eq.s32.totalorder %s17, 1
      %p140 = por %p138, %p139
      %p141 = scmp.ne.s32.totalorder %s130, %s131
      %p142 = scmp.eq.s32.totalorder %s17, 0
      %p143 = por %p141, %p142
      %p144 = scmp.ne.s32.totalorder %s130, %s131
      %p145 = scmp.eq.s32.totalorder %s18, 1
      %p146 = por %p144, %p145
      %p148 = scmp.ne.s32.totalorder %s131, %s147
      %p149 = scmp.eq.s32.totalorder %s18, 0
      %p150 = por %p148, %p149
      %p151 = scmp.le.s32.totalorder 1, %s12
      %p152 = scmp.lt.s32.totalorder %s12, 3
      %p153 = pnand %p151, %p152
      %p154 = pneg %p153
      // Predicated region
      $region9: #{tpu_custom_call.1} parent=5 // pred_check
        _
      $region10: #{tpu_custom_call.1} parent=5 // pred_check_branch
        %156 = sbr.rel (%p153) target = $region12
      $region11: #{tpu_custom_call.1} parent=5 // pred_region
        %s157 = ssub.s32 %s12, 1
      $region12: #{tpu_custom_call.1} parent=5 // pred_fallthru
        _
      %p158 = scmp.lt.s32.totalorder %s12, 2
      // Predicated region
      $region13: #{tpu_custom_call.1} parent=5 // pred_check
        %p159 = pneg %p158
      $region14: #{tpu_custom_call.1} parent=5 // pred_check_branch
        %161 = sbr.rel (%p159) target = $region16
      $region15: #{tpu_custom_call.1} parent=5 // pred_region
        // Predicated region
        $region17: #{tpu_custom_call.1} parent=15 // pred_check
          %p162 = pneg %p53
        $region18: #{tpu_custom_call.1} parent=15 // pred_check_branch
          %164 = sbr.rel (%p162) target = $region20
        $region19: #{tpu_custom_call.1} parent=15 // pred_region
          %s165 = sand.u32 %s43, 1
          %s166 = sand.u32 %s43, 1
          %s167 = smul.addr %s166, 16
          %s168 = scalar_lea.vmem [#allocation5], %s167
          %s169 = smul.u32 2, %s19
          %s170 = smul.addr %s169, 3
          %s171 = sadd.s32 %s20, %s170
          %s172 = smul.addr %s171, 8
          %s173 = scalar_lea.vmem %s0, %s172
          // Predicated region
          $region21: #{tpu_custom_call.1} parent=19 // pred_check
            _
          $region22: #{tpu_custom_call.1} parent=19 // pred_check_branch
            %175 = sbr.rel (0) target = $region24
          $region23: #{tpu_custom_call.1} parent=19 // pred_region
            // Predicated region
            $region25: #{tpu_custom_call.1} parent=23 // pred_check
              _
            $region26: #{tpu_custom_call.1} parent=23 // pred_check_branch
              %177 = sbr.rel (0) target = $region28
            $region27: #{tpu_custom_call.1} parent=23 // pred_region
              // Predicated region
              $region40: #{tpu_custom_call.1} parent=27 // pred_check
                _
              $region41: #{tpu_custom_call.1} parent=27 // pred_check_branch
                %195 = sbr.rel (0) target = $region43
              $region42: #{tpu_custom_call.1} parent=27 // pred_region
                loop: start=0, step=1, limit=1
                $region44: #{tpu_custom_call.1} parent=42 // loop_pre_header
                  _
                $region45: #{tpu_custom_call.1} parent=42 // loop_header
                  %s197 = sphi 0, %s201
                  %p198 = scmp.ge.s32.totalorder %s197, 1
                  %s202 = sphi %s173, %s173
                  %s203 = sphi %s168, %s168
                $region46: #{tpu_custom_call.1} parent=42 // loop_header_branch
                  %200 = sbr.rel (%p198) target = $region50
                $region47: #{tpu_custom_call.1} parent=42 // loop_body
                  %v204 = vld [vmem:[%s202] sm:$0xff]
                  %205 = vst [vmem:[%s203] sm:$0xff] %v204
                  %v206 = vld [vmem:[%s202 + $0x18] sm:$0xff]
                  %207 = vst [vmem:[%s203 + $0x8] sm:$0xff] %v206
                $region48: #{tpu_custom_call.1} parent=42 // loop_footer
                  %s201 = sadd.s32 1, %s197
                $region49: #{tpu_custom_call.1} parent=42 // loop_footer_branch
                  %196 = sbr.rel target = $region45
                $region50: #{tpu_custom_call.1} parent=42 // loop_exit
                  _
              $region43: #{tpu_custom_call.1} parent=27 // pred_fallthru
                _
              // Predicated region
              $region51: #{tpu_custom_call.1} parent=27 // pred_check
                _
              $region52: #{tpu_custom_call.1} parent=27 // pred_check_branch
                %209 = sbr.rel target = $region54
              $region53: #{tpu_custom_call.1} parent=27 // pred_region
                _
              $region54: #{tpu_custom_call.1} parent=27 // pred_fallthru
                _
            $region28: #{tpu_custom_call.1} parent=23 // pred_fallthru
              _
            // Predicated region
            $region29: #{tpu_custom_call.1} parent=23 // pred_check
              _
            $region30: #{tpu_custom_call.1} parent=23 // pred_check_branch
              %179 = sbr.rel target = $region32
            $region31: #{tpu_custom_call.1} parent=23 // pred_region
              %s181 = ssub.s32 256, 1
              loop: start=0, step=1, limit=1
              $region33: #{tpu_custom_call.1} parent=31 // loop_pre_header
                _
              $region34: #{tpu_custom_call.1} parent=31 // loop_header
                %s183 = sphi 0, %s187
                %p184 = scmp.ge.s32.totalorder %s183, 1
                %s188 = sphi %s173, %s173
                %s189 = sphi %s168, %s168
              $region35: #{tpu_custom_call.1} parent=31 // loop_header_branch
                %186 = sbr.rel (%p184) target = $region39
              $region36: #{tpu_custom_call.1} parent=31 // loop_body
                %v190 = vld [vmem:[%s188] sm:%s181]
                %191 = vst [vmem:[%s189] sm:%s181] %v190
                %v192 = vld [vmem:[%s188 + $0x18] sm:%s181]
                %193 = vst [vmem:[%s189 + $0x8] sm:%s181] %v192
              $region37: #{tpu_custom_call.1} parent=31 // loop_footer
                %s187 = sadd.s32 1, %s183
              $region38: #{tpu_custom_call.1} parent=31 // loop_footer_branch
                %182 = sbr.rel target = $region34
              $region39: #{tpu_custom_call.1} parent=31 // loop_exit
                _
            $region32: #{tpu_custom_call.1} parent=23 // pred_fallthru
              _
          $region24: #{tpu_custom_call.1} parent=19 // pred_fallthru
            _
          %210 = vnop
        $region20: #{tpu_custom_call.1} parent=15 // pred_fallthru
          _
        // Predicated region
        $region55: #{tpu_custom_call.1} parent=15 // pred_check
          %p211 = pneg %p81
        $region56: #{tpu_custom_call.1} parent=15 // pred_check_branch
          %213 = sbr.rel (%p211) target = $region58
        $region57: #{tpu_custom_call.1} parent=15 // pred_region
          %s214 = sand.u32 %s71, 1
          %s215 = sand.u32 %s71, 1
          %s216 = smul.addr %s215, 16
          %s217 = scalar_lea.vmem [#allocation6], %s216
          %s218 = smul.u32 2, %s19
          %s219 = sadd.s32 %s21, 1
          %s220 = smul.addr %s218, 3
          %s221 = sadd.s32 %s219, %s220
          %s222 = smul.addr %s221, 8
          %s223 = scalar_lea.vmem %s1, %s222
          // Predicated region
          $region59: #{tpu_custom_call.1} parent=57 // pred_check
            _
          $region60: #{tpu_custom_call.1} parent=57 // pred_check_branch
            %225 = sbr.rel (0) target = $region62
          $region61: #{tpu_custom_call.1} parent=57 // pred_region
            // Predicated region
            $region63: #{tpu_custom_call.1} parent=61 // pred_check
              _
            $region64: #{tpu_custom_call.1} parent=61 // pred_check_branch
              %227 = sbr.rel (0) target = $region66
            $region65: #{tpu_custom_call.1} parent=61 // pred_region
              // Predicated region
              $region78: #{tpu_custom_call.1} parent=65 // pred_check
                _
              $region79: #{tpu_custom_call.1} parent=65 // pred_check_branch
                %245 = sbr.rel (0) target = $region81
              $region80: #{tpu_custom_call.1} parent=65 // pred_region
                loop: start=0, step=1, limit=1
                $region82: #{tpu_custom_call.1} parent=80 // loop_pre_header
                  _
                $region83: #{tpu_custom_call.1} parent=80 // loop_header
                  %s247 = sphi 0, %s251
                  %p248 = scmp.ge.s32.totalorder %s247, 1
                  %s252 = sphi %s223, %s223
                  %s253 = sphi %s217, %s217
                $region84: #{tpu_custom_call.1} parent=80 // loop_header_branch
                  %250 = sbr.rel (%p248) target = $region88
                $region85: #{tpu_custom_call.1} parent=80 // loop_body
                  %v254 = vld [vmem:[%s252] sm:$0xff]
                  %255 = vst [vmem:[%s253] sm:$0xff] %v254
                  %v256 = vld [vmem:[%s252 + $0x18] sm:$0xff]
                  %257 = vst [vmem:[%s253 + $0x8] sm:$0xff] %v256
                $region86: #{tpu_custom_call.1} parent=80 // loop_footer
                  %s251 = sadd.s32 1, %s247
                $region87: #{tpu_custom_call.1} parent=80 // loop_footer_branch
                  %246 = sbr.rel target = $region83
                $region88: #{tpu_custom_call.1} parent=80 // loop_exit
                  _
              $region81: #{tpu_custom_call.1} parent=65 // pred_fallthru
                _
              // Predicated region
              $region89: #{tpu_custom_call.1} parent=65 // pred_check
                _
              $region90: #{tpu_custom_call.1} parent=65 // pred_check_branch
                %259 = sbr.rel target = $region92
              $region91: #{tpu_custom_call.1} parent=65 // pred_region
                _
              $region92: #{tpu_custom_call.1} parent=65 // pred_fallthru
                _
            $region66: #{tpu_custom_call.1} parent=61 // pred_fallthru
              _
            // Predicated region
            $region67: #{tpu_custom_call.1} parent=61 // pred_check
              _
            $region68: #{tpu_custom_call.1} parent=61 // pred_check_branch
              %229 = sbr.rel target = $region70
            $region69: #{tpu_custom_call.1} parent=61 // pred_region
              %s231 = ssub.s32 256, 1
              loop: start=0, step=1, limit=1
              $region71: #{tpu_custom_call.1} parent=69 // loop_pre_header
                _
              $region72: #{tpu_custom_call.1} parent=69 // loop_header
                %s233 = sphi 0, %s237
                %p234 = scmp.ge.s32.totalorder %s233, 1
                %s238 = sphi %s223, %s223
                %s239 = sphi %s217, %s217
              $region73: #{tpu_custom_call.1} parent=69 // loop_header_branch
                %236 = sbr.rel (%p234) target = $region77
              $region74: #{tpu_custom_call.1} parent=69 // loop_body
                %v240 = vld [vmem:[%s238] sm:%s231]
                %241 = vst [vmem:[%s239] sm:%s231] %v240
                %v242 = vld [vmem:[%s238 + $0x18] sm:%s231]
                %243 = vst [vmem:[%s239 + $0x8] sm:%s231] %v242
              $region75: #{tpu_custom_call.1} parent=69 // loop_footer
                %s237 = sadd.s32 1, %s233
              $region76: #{tpu_custom_call.1} parent=69 // loop_footer_branch
                %232 = sbr.rel target = $region72
              $region77: #{tpu_custom_call.1} parent=69 // loop_exit
                _
            $region70: #{tpu_custom_call.1} parent=61 // pred_fallthru
              _
          $region62: #{tpu_custom_call.1} parent=57 // pred_fallthru
            _
          %260 = vnop
        $region58: #{tpu_custom_call.1} parent=15 // pred_fallthru
          _
        // Predicated region
        $region93: #{tpu_custom_call.1} parent=15 // pred_check
          %p261 = pneg %p109
        $region94: #{tpu_custom_call.1} parent=15 // pred_check_branch
          %263 = sbr.rel (%p261) target = $region96
        $region95: #{tpu_custom_call.1} parent=15 // pred_region
          %s264 = sand.u32 %s99, 1
          %s265 = sand.u32 %s99, 1
          %s266 = smul.addr %s265, 16
          %s267 = scalar_lea.vmem [#allocation7], %s266
          %s268 = smul.u32 2, %s19
          %s269 = sadd.s32 %s21, 2
          %s270 = smul.addr %s268, 3
          %s271 = sadd.s32 %s269, %s270
          %s272 = smul.addr %s271, 8
          %s273 = scalar_lea.vmem %s2, %s272
          // Predicated region
          $region97: #{tpu_custom_call.1} parent=95 // pred_check
            _
          $region98: #{tpu_custom_call.1} parent=95 // pred_check_branch
            %275 = sbr.rel (0) target = $region100
          $region99: #{tpu_custom_call.1} parent=95 // pred_region
            // Predicated region
            $region101: #{tpu_custom_call.1} parent=99 // pred_check
              _
            $region102: #{tpu_custom_call.1} parent=99 // pred_check_branch
              %277 = sbr.rel (0) target = $region104
            $region103: #{tpu_custom_call.1} parent=99 // pred_region
              // Predicated region
              $region116: #{tpu_custom_call.1} parent=103 // pred_check
                _
              $region117: #{tpu_custom_call.1} parent=103 // pred_check_branch
                %295 = sbr.rel (0) target = $region119
              $region118: #{tpu_custom_call.1} parent=103 // pred_region
                loop: start=0, step=1, limit=1
                $region120: #{tpu_custom_call.1} parent=118 // loop_pre_header
                  _
                $region121: #{tpu_custom_call.1} parent=118 // loop_header
                  %s297 = sphi 0, %s301
                  %p298 = scmp.ge.s32.totalorder %s297, 1
                  %s302 = sphi %s273, %s273
                  %s303 = sphi %s267, %s267
                $region122: #{tpu_custom_call.1} parent=118 // loop_header_branch
                  %300 = sbr.rel (%p298) target = $region126
                $region123: #{tpu_custom_call.1} parent=118 // loop_body
                  %v304 = vld [vmem:[%s302] sm:$0xff]
                  %305 = vst [vmem:[%s303] sm:$0xff] %v304
                  %v306 = vld [vmem:[%s302 + $0x18] sm:$0xff]
                  %307 = vst [vmem:[%s303 + $0x8] sm:$0xff] %v306
                $region124: #{tpu_custom_call.1} parent=118 // loop_footer
                  %s301 = sadd.s32 1, %s297
                $region125: #{tpu_custom_call.1} parent=118 // loop_footer_branch
                  %296 = sbr.rel target = $region121
                $region126: #{tpu_custom_call.1} parent=118 // loop_exit
                  _
              $region119: #{tpu_custom_call.1} parent=103 // pred_fallthru
                _
              // Predicated region
              $region127: #{tpu_custom_call.1} parent=103 // pred_check
                _
              $region128: #{tpu_custom_call.1} parent=103 // pred_check_branch
                %309 = sbr.rel target = $region130
              $region129: #{tpu_custom_call.1} parent=103 // pred_region
                _
              $region130: #{tpu_custom_call.1} parent=103 // pred_fallthru
                _
            $region104: #{tpu_custom_call.1} parent=99 // pred_fallthru
              _
            // Predicated region
            $region105: #{tpu_custom_call.1} parent=99 // pred_check
              _
            $region106: #{tpu_custom_call.1} parent=99 // pred_check_branch
              %279 = sbr.rel target = $region108
            $region107: #{tpu_custom_call.1} parent=99 // pred_region
              %s281 = ssub.s32 256, 1
              loop: start=0, step=1, limit=1
              $region109: #{tpu_custom_call.1} parent=107 // loop_pre_header
                _
              $region110: #{tpu_custom_call.1} parent=107 // loop_header
                %s283 = sphi 0, %s287
                %p284 = scmp.ge.s32.totalorder %s283, 1
                %s288 = sphi %s273, %s273
                %s289 = sphi %s267, %s267
              $region111: #{tpu_custom_call.1} parent=107 // loop_header_branch
                %286 = sbr.rel (%p284) target = $region115
              $region112: #{tpu_custom_call.1} parent=107 // loop_body
                %v290 = vld [vmem:[%s288] sm:%s281]
                %291 = vst [vmem:[%s289] sm:%s281] %v290
                %v292 = vld [vmem:[%s288 + $0x18] sm:%s281]
                %293 = vst [vmem:[%s289 + $0x8] sm:%s281] %v292
              $region113: #{tpu_custom_call.1} parent=107 // loop_footer
                %s287 = sadd.s32 1, %s283
              $region114: #{tpu_custom_call.1} parent=107 // loop_footer_branch
                %282 = sbr.rel target = $region110
              $region115: #{tpu_custom_call.1} parent=107 // loop_exit
                _
            $region108: #{tpu_custom_call.1} parent=99 // pred_fallthru
              _
          $region100: #{tpu_custom_call.1} parent=95 // pred_fallthru
            _
          %310 = vnop
        $region96: #{tpu_custom_call.1} parent=15 // pred_fallthru
          _
      $region16: #{tpu_custom_call.1} parent=5 // pred_fallthru
        _
      %p311 = scmp.le.s32.totalorder 1, %s12
      %p312 = scmp.lt.s32.totalorder %s12, 3
      %p313 = pnand %p311, %p312
      %p314 = pneg %p313
      // Predicated region
      $region131: #{tpu_custom_call.1} parent=5 // pred_check
        _
      $region132: #{tpu_custom_call.1} parent=5 // pred_check_branch
        %316 = sbr.rel (%p313) target = $region134
      $region133: #{tpu_custom_call.1} parent=5 // pred_region
        %s317 = ssub.s32 %s12, 1
        %s318 = sand.u32 %s46, 1
        %s319 = sand.u32 %s46, 1
        %s320 = smul.addr %s319, 16
        %s321 = scalar_lea.vmem [#allocation5], %s320
        // Predicated region
        $region135: #{tpu_custom_call.1} parent=133 // pred_check
          %p322 = pneg %p59
        $region136: #{tpu_custom_call.1} parent=133 // pred_check_branch
          %324 = sbr.rel (%p322) target = $region138
        $region137: #{tpu_custom_call.1} parent=133 // pred_region
          _
        $region138: #{tpu_custom_call.1} parent=133 // pred_fallthru
          _
        %s325 = sand.u32 %s74, 1
        %s326 = sand.u32 %s74, 1
        %s327 = smul.addr %s326, 16
        %s328 = scalar_lea.vmem [#allocation6], %s327
        // Predicated region
        $region139: #{tpu_custom_call.1} parent=133 // pred_check
          %p329 = pneg %p87
        $region140: #{tpu_custom_call.1} parent=133 // pred_check_branch
          %331 = sbr.rel (%p329) target = $region142
        $region141: #{tpu_custom_call.1} parent=133 // pred_region
          _
        $region142: #{tpu_custom_call.1} parent=133 // pred_fallthru
          _
        %s332 = sand.u32 %s102, 1
        %s333 = sand.u32 %s102, 1
        %s334 = smul.addr %s333, 16
        %s335 = scalar_lea.vmem [#allocation7], %s334
        // Predicated region
        $region143: #{tpu_custom_call.1} parent=133 // pred_check
          %p336 = pneg %p115
        $region144: #{tpu_custom_call.1} parent=133 // pred_check_branch
          %338 = sbr.rel (%p336) target = $region146
        $region145: #{tpu_custom_call.1} parent=133 // pred_region
          _
        $region146: #{tpu_custom_call.1} parent=133 // pred_fallthru
          _
        %s339 = sand.u32 %s46, 1
        %s340 = sand.u32 %s46, 1
        %s341 = smul.addr %s340, 16
        %s342 = scalar_lea.vmem [#allocation5], %s341
        %p343 = pneg %p59
        %p344 = pneg %p56
        %s345 = sand.u32 %s74, 1
        %s346 = sand.u32 %s74, 1
        %s347 = smul.addr %s346, 16
        %s348 = scalar_lea.vmem [#allocation6], %s347
        %p349 = pneg %p87
        %p350 = pneg %p84
        %s351 = sand.u32 %s102, 1
        %s352 = sand.u32 %s102, 1
        %s353 = smul.addr %s352, 16
        %s354 = scalar_lea.vmem [#allocation7], %s353
        %p355 = pneg %p115
        %p356 = pneg %p112
        %p357 = pneg %p143
        %p358 = pneg %p140
        %s359 = sand.u32 %s130, 1
        %s360 = scalar_lea.sflag [#allocation9], %s359
        %s361 = sand.u32 %s130, 1
        %s362 = smul.addr %s361, 16
        %s363 = scalar_lea.vmem [#allocation8], %s362
        %s364 = smul.u32 2, %s22
        %s365 = smul.u32 2, %s22
        %s366 = smul.u32 2, %s22
        %s367 = smul.u32 2, %s22
        %p368 = scmp.eq.s32.totalorder %s24, 0
        // Predicated region
        $region147: #{tpu_custom_call.1} parent=133 // pred_check
          %p369 = pneg %p368
        $region148: #{tpu_custom_call.1} parent=133 // pred_check_branch
          %371 = sbr.rel (%p369) target = $region150
        $region149: #{tpu_custom_call.1} parent=133 // pred_region
          %vm372 = vcmask 122880
          %373 = vst.msk [vmem:[#allocation2] sm:$0x1] %vm372, -inf
          %374 = vst.msk [vmem:[#allocation2 + $0x1] sm:$0x1] %vm372, -inf
          %375 = vst.msk [vmem:[#allocation3] sm:$0x1] %vm372, 0.0
          %376 = vst.msk [vmem:[#allocation3 + $0x1] sm:$0x1] %vm372, 0.0
          %vm377 = vcmask 130048
          %378 = vst.msk [vmem:[#allocation4] sm:$0xff] %vm377, 0.0
          %379 = vst.msk [vmem:[#allocation4 + $0x8] sm:$0xff] %vm377, 0.0
        $region150: #{tpu_custom_call.1} parent=133 // pred_fallthru
          _
        %v380 = vld [vmem:[%s328] sm:$0xff]
        %v381 = vld [vmem:[%s328 + $0x8] sm:$0xff]
        %v382 = vld [vmem:[%s335] sm:$0xff]
        %v383 = vld [vmem:[%s335 + $0x8] sm:$0xff]
        %v384 = vld [vmem:[%s321] sm:$0xff]
        %v385 = vld [vmem:[%s321 + $0x8] sm:$0xff]
        %v386 = vmul.f32 %v384, 0.35355338
        %v387 = vmul.f32 %v385, 0.35355338
        %388 = vxpose.xlu0.b32.start [1/16] %v380, 128
        %389 = vxpose.xlu0.b32.cont [2/16] 0.0, 128
        %390 = vxpose.xlu0.b32.cont [3/16] 0.0, 128
        %391 = vxpose.xlu0.b32.cont [4/16] 0.0, 128
        %392 = vxpose.xlu0.b32.cont [5/16] 0.0, 128
        %393 = vxpose.xlu0.b32.cont [6/16] 0.0, 128
        %394 = vxpose.xlu0.b32.cont [7/16] 0.0, 128
        %395 = vxpose.xlu0.b32.cont [8/16] 0.0, 128
        %396 = vxpose.xlu0.b32.cont [9/16] 0.0, 128
        %397 = vxpose.xlu0.b32.cont [10/16] 0.0, 128
        %398 = vxpose.xlu0.b32.cont [11/16] 0.0, 128
        %399 = vxpose.xlu0.b32.cont [12/16] 0.0, 128
        %400 = vxpose.xlu0.b32.cont [13/16] 0.0, 128
        %401 = vxpose.xlu0.b32.cont [14/16] 0.0, 128
        %402 = vxpose.xlu0.b32.cont [15/16] 0.0, 128
        %403 = vxpose.xlu0.b32.end [16/16] 0.0, 128
        %v404 = vpop.trf.xlu0
        %v405 = vpop.trf.xlu0
        %v406 = vpop.trf.xlu0
        %v407 = vpop.trf.xlu0
        %v408 = vpop.trf.xlu0
        %v409 = vpop.trf.xlu0
        %v410 = vpop.trf.xlu0
        %v411 = vpop.trf.xlu0
        %v412 = vpop.trf.xlu0
        %v413 = vpop.trf.xlu0
        %v414 = vpop.trf.xlu0
        %v415 = vpop.trf.xlu0
        %v416 = vpop.trf.xlu0
        %v417 = vpop.trf.xlu0
        %v418 = vpop.trf.xlu0
        %v419 = vpop.trf.xlu0
        %vm420 = vcmask 64512
        %v422 = vsel %vm420, %v404, 0
        %v425 = vsel %vm420, %v405, 0
        %427 = vmatpush.msra.mxu0 0.0
        %428 = vmatpush.msra.mxu0 0.0
        %429 = vmatpush.msra.mxu0 0.0
        %430 = vmatpush.msra.mxu0 0.0
        %431 = vmatpush.msra.mxu0 0.0
        %432 = vmatpush.msra.mxu0 0.0
        %433 = vmatpush.msra.mxu0 0.0
        %434 = vmatpush.msra.mxu0 0.0
        %435 = vmatpush.msra.mxu0 0.0
        %436 = vmatpush.msra.mxu0 0.0
        %437 = vmatpush.msra.mxu0 0.0
        %438 = vmatpush.msra.mxu0 0.0
        %439 = vmatpush.msra.mxu0 0.0
        %440 = vmatpush.msra.mxu0 0.0
        %441 = vmatpush.msra.mxu0 0.0
        %442 = vmatpush.msra.mxu0 %v386
        %443 = vmatmul.f32.gmra.mxu0 %v422
        %v444 = vpop.f32.mrf.mxu0
        %v445 = vadd.f32 0.0, %v444
        %446 = vmatmul.f32.gmra.mxu0 %v425
        %v447 = vpop.f32.mrf.mxu0
        %v448 = vadd.f32 0.0, %v447
        %449 = vdwg.mxu0
        %450 = vxpose.xlu0.b32.start [1/16] %v381, 128
        %451 = vxpose.xlu0.b32.cont [2/16] 0.0, 128
        %452 = vxpose.xlu0.b32.cont [3/16] 0.0, 128
        %453 = vxpose.xlu0.b32.cont [4/16] 0.0, 128
        %454 = vxpose.xlu0.b32.cont [5/16] 0.0, 128
        %455 = vxpose.xlu0.b32.cont [6/16] 0.0, 128
        %456 = vxpose.xlu0.b32.cont [7/16] 0.0, 128
        %457 = vxpose.xlu0.b32.cont [8/16] 0.0, 128
        %458 = vxpose.xlu0.b32.cont [9/16] 0.0, 128
        %459 = vxpose.xlu0.b32.cont [10/16] 0.0, 128
        %460 = vxpose.xlu0.b32.cont [11/16] 0.0, 128
        %461 = vxpose.xlu0.b32.cont [12/16] 0.0, 128
        %462 = vxpose.xlu0.b32.cont [13/16] 0.0, 128
        %463 = vxpose.xlu0.b32.cont [14/16] 0.0, 128
        %464 = vxpose.xlu0.b32.cont [15/16] 0.0, 128
        %465 = vxpose.xlu0.b32.end [16/16] 0.0, 128
        %v466 = vpop.trf.xlu0
        %v467 = vpop.trf.xlu0
        %v468 = vpop.trf.xlu0
        %v469 = vpop.trf.xlu0
        %v470 = vpop.trf.xlu0
        %v471 = vpop.trf.xlu0
        %v472 = vpop.trf.xlu0
        %v473 = vpop.trf.xlu0
        %v474 = vpop.trf.xlu0
        %v475 = vpop.trf.xlu0
        %v476 = vpop.trf.xlu0
        %v477 = vpop.trf.xlu0
        %v478 = vpop.trf.xlu0
        %v479 = vpop.trf.xlu0
        %v480 = vpop.trf.xlu0
        %v481 = vpop.trf.xlu0
        %v483 = vsel %vm420, %v466, 0
        %v486 = vsel %vm420, %v467, 0
        %488 = vmatpush.msra.mxu0 0.0
        %489 = vmatpush.msra.mxu0 0.0
        %490 = vmatpush.msra.mxu0 0.0
        %491 = vmatpush.msra.mxu0 0.0
        %492 = vmatpush.msra.mxu0 0.0
        %493 = vmatpush.msra.mxu0 0.0
        %494 = vmatpush.msra.mxu0 0.0
        %495 = vmatpush.msra.mxu0 0.0
        %496 = vmatpush.msra.mxu0 0.0
        %497 = vmatpush.msra.mxu0 0.0
        %498 = vmatpush.msra.mxu0 0.0
        %499 = vmatpush.msra.mxu0 0.0
        %500 = vmatpush.msra.mxu0 0.0
        %501 = vmatpush.msra.mxu0 0.0
        %502 = vmatpush.msra.mxu0 0.0
        %503 = vmatpush.msra.mxu0 %v387
        %504 = vmatmul.f32.gmra.mxu0 %v483
        %v505 = vpop.f32.mrf.mxu0
        %v506 = vadd.f32 0.0, %v505
        %507 = vmatmul.f32.gmra.mxu0 %v486
        %v508 = vpop.f32.mrf.mxu0
        %v509 = vadd.f32 0.0, %v508
        %510 = vdwg.mxu0
        %v511 = vld [vmem:[#allocation2] sm:$0x1]
        %v512 = vld [vmem:[#allocation2 + $0x1] sm:$0x1]
        %vm513 = vcmask 130048
        %v514 = vsel %vm513, %v445, -inf
        %v515 = vsel %vm513, %v448, -inf
        %v516 = vmax.f32 %v514, %v515
        %v517 = vrot.slane %v516, 4
        %v518 = vmax.f32 %v516, %v517
        %v519 = vrot.slane %v518, 2
        %v520 = vmax.f32 %v518, %v519
        %v521 = vrot.slane %v520, 1
        %v522 = vmax.f32 %v520, %v521
        %v523 = vsel %vm513, %v506, -inf
        %v524 = vsel %vm513, %v509, -inf
        %v525 = vmax.f32 %v523, %v524
        %v526 = vrot.slane %v525, 4
        %v527 = vmax.f32 %v525, %v526
        %v528 = vrot.slane %v527, 2
        %v529 = vmax.f32 %v527, %v528
        %v530 = vrot.slane %v529, 1
        %v531 = vmax.f32 %v529, %v530
        %v532 = vmax.f32 %v511, %v522
        %v533 = vmax.f32 %v512, %v531
        %v534 = vsub.f32 %v511, %v532
        %v535 = vsub.f32 %v512, %v533
        %v536 = vmul.f32 %v534, 1.442695
        %v537 = vpow.pop %v536
        %v538 = vmul.f32 %v535, 1.442695
        %v539 = vpow.pop %v538
        %v542 = vperm.slane %v532, 0
        %v543 = vperm.slane %v533, 0
        %v546 = vsub.f32 %v445, %v542
        %v547 = vsub.f32 %v448, %v542
        %v548 = vsub.f32 %v506, %v543
        %v549 = vsub.f32 %v509, %v543
        %v550 = vmul.f32 %v546, 1.442695
        %v551 = vpow.pop %v550
        %v552 = vmul.f32 %v547, 1.442695
        %v553 = vpow.pop %v552
        %v554 = vmul.f32 %v548, 1.442695
        %v555 = vpow.pop %v554
        %v556 = vmul.f32 %v549, 1.442695
        %v557 = vpow.pop %v556
        %v558 = vld [vmem:[#allocation3] sm:$0x1]
        %v559 = vld [vmem:[#allocation3 + $0x1] sm:$0x1]
        %v560 = vmul.f32 %v537, %v558
        %v561 = vmul.f32 %v539, %v559
        %v562 = vsel %vm513, %v551, 0.0
        %v563 = vsel %vm513, %v553, 0.0
        %v564 = vadd.f32 %v562, %v563
        %v565 = vrot.slane %v564, 4
        %v566 = vadd.f32 %v564, %v565
        %v567 = vrot.slane %v566, 2
        %v568 = vadd.f32 %v566, %v567
        %v569 = vrot.slane %v568, 1
        %v570 = vadd.f32 %v568, %v569
        %v571 = vsel %vm513, %v555, 0.0
        %v572 = vsel %vm513, %v557, 0.0
        %v573 = vadd.f32 %v571, %v572
        %v574 = vrot.slane %v573, 4
        %v575 = vadd.f32 %v573, %v574
        %v576 = vrot.slane %v575, 2
        %v577 = vadd.f32 %v575, %v576
        %v578 = vrot.slane %v577, 1
        %v579 = vadd.f32 %v577, %v578
        %v580 = vadd.f32 %v560, %v570
        %v581 = vadd.f32 %v561, %v579
        %vm582 = vcmask 122880
        %583 = vst.msk [vmem:[#allocation3] sm:$0x1] %vm582, %v580
        %584 = vst.msk [vmem:[#allocation3 + $0x1] sm:$0x1] %vm582, %v581
        %v586 = vsel %vm513, %v382, 0
        %588 = vmatpush.msra.mxu0 0.0
        %589 = vmatpush.msra.mxu0 0.0
        %590 = vmatpush.msra.mxu0 0.0
        %591 = vmatpush.msra.mxu0 0.0
        %592 = vmatpush.msra.mxu0 0.0
        %593 = vmatpush.msra.mxu0 0.0
        %594 = vmatpush.msra.mxu0 0.0
        %595 = vmatpush.msra.mxu0 0.0
        %596 = vmatpush.msra.mxu0 0.0
        %597 = vmatpush.msra.mxu0 0.0
        %598 = vmatpush.msra.mxu0 0.0
        %599 = vmatpush.msra.mxu0 0.0
        %600 = vmatpush.msra.mxu0 0.0
        %601 = vmatpush.msra.mxu0 0.0
        %602 = vmatpush.msra.mxu0 %v553
        %603 = vmatpush.msra.mxu0 %v551
        %604 = vmatmul.f32.gmra.mxu0 %v586
        %v605 = vpop.f32.mrf.mxu0
        %v606 = vadd.f32 0.0, %v605
        %607 = vdwg.mxu0
        %v609 = vsel %vm513, %v383, 0
        %611 = vmatpush.msra.mxu0 0.0
        %612 = vmatpush.msra.mxu0 0.0
        %613 = vmatpush.msra.mxu0 0.0
        %614 = vmatpush.msra.mxu0 0.0
        %615 = vmatpush.msra.mxu0 0.0
        %616 = vmatpush.msra.mxu0 0.0
        %617 = vmatpush.msra.mxu0 0.0
        %618 = vmatpush.msra.mxu0 0.0
        %619 = vmatpush.msra.mxu0 0.0
        %620 = vmatpush.msra.mxu0 0.0
        %621 = vmatpush.msra.mxu0 0.0
        %622 = vmatpush.msra.mxu0 0.0
        %623 = vmatpush.msra.mxu0 0.0
        %624 = vmatpush.msra.mxu0 0.0
        %625 = vmatpush.msra.mxu0 %v557
        %626 = vmatpush.msra.mxu0 %v555
        %627 = vmatmul.f32.gmra.mxu0 %v609
        %v628 = vpop.f32.mrf.mxu0
        %v629 = vadd.f32 0.0, %v628
        %630 = vdwg.mxu0
        %v631 = vld [vmem:[#allocation4] sm:$0xff]
        %v632 = vld [vmem:[#allocation4 + $0x8] sm:$0xff]
        %v635 = vperm.slane %v537, 0
        %v636 = vperm.slane %v539, 0
        %v639 = vmul.f32 %v635, %v631
        %v640 = vmul.f32 %v636, %v632
        %v641 = vadd.f32 %v639, %v606
        %v642 = vadd.f32 %v640, %v629
        %643 = vst.msk [vmem:[#allocation4] sm:$0xff] %vm513, %v641
        %644 = vst.msk [vmem:[#allocation4 + $0x8] sm:$0xff] %vm513, %v642
        %645 = vst.msk [vmem:[#allocation2] sm:$0x1] %vm582, %v532
        %646 = vst.msk [vmem:[#allocation2 + $0x1] sm:$0x1] %vm582, %v533
        // Predicated region
        $region151: #{tpu_custom_call.1} parent=133 // pred_check
          %p647 = pneg %p368
        $region152: #{tpu_custom_call.1} parent=133 // pred_check_branch
          %649 = sbr.rel (%p647) target = $region154
        $region153: #{tpu_custom_call.1} parent=133 // pred_region
          %v650 = vld [vmem:[#allocation3] sm:$0x1]
          %v651 = vld [vmem:[#allocation3 + $0x1] sm:$0x1]
          %v652 = vrcp.pop %v650
          %v653 = vmul.f32 %v650, %v652
          %v654 = vsub.f32 1.0, %v653
          %v655 = vmul.f32 %v652, %v654
          %v656 = vadd.f32 %v652, %v655
          %vm657 = vweird.f32 %v650
          %vm658 = vweird.f32 %v652
          %vm659 = vmor %vm657, %vm658
          %v660 = vsel %vm659, %v652, %v656
          %v661 = vand.u32 2147483647, %v650
          %vm662 = vcmp.eq.f32.partialorder %v661, 8.507059e+37
          %v663 = vand.u32 %v650, 2147483648
          %v664 = vor.u32 1.1754944e-38, %v663
          %v665 = vsel %vm662, %v664, %v660
          %v666 = vrcp.pop %v651
          %v667 = vmul.f32 %v651, %v666
          %v668 = vsub.f32 1.0, %v667
          %v669 = vmul.f32 %v666, %v668
          %v670 = vadd.f32 %v666, %v669
          %vm671 = vweird.f32 %v651
          %vm672 = vweird.f32 %v666
          %vm673 = vmor %vm671, %vm672
          %v674 = vsel %vm673, %v666, %v670
          %v675 = vand.u32 2147483647, %v651
          %vm676 = vcmp.eq.f32.partialorder %v675, 8.507059e+37
          %v677 = vand.u32 %v651, 2147483648
          %v678 = vor.u32 1.1754944e-38, %v677
          %v679 = vsel %vm676, %v678, %v674
          %v680 = vld [vmem:[#allocation4] sm:$0xff]
          %v681 = vld [vmem:[#allocation4 + $0x8] sm:$0xff]
          %v684 = vperm.slane %v665, 0
          %v685 = vperm.slane %v679, 0
          %v688 = vmul.f32 %v680, %v684
          %v689 = vmul.f32 %v681, %v685
          %690 = vst.msk [vmem:[%s363] sm:$0xff] %vm513, %v688
          %691 = vst.msk [vmem:[%s363 + $0x8] sm:$0xff] %vm513, %v689
        $region154: #{tpu_custom_call.1} parent=133 // pred_fallthru
          _
        %s692 = sand.u32 %s130, 1
        %s693 = scalar_lea.sflag [#allocation9], %s692
        %s694 = sand.u32 %s130, 1
        %s695 = smul.addr %s694, 16
        %s696 = scalar_lea.vmem [#allocation8], %s695
        // Predicated region
        $region155: #{tpu_custom_call.1} parent=133 // pred_check
          %p697 = pneg %p140
        $region156: #{tpu_custom_call.1} parent=133 // pred_check_branch
          %699 = sbr.rel (%p697) target = $region158
        $region157: #{tpu_custom_call.1} parent=133 // pred_region
          %s700 = smul.u32 2, %s22
          %702 = vsyncadd %s693, 0
          %s703 = sadd.s32 %s23, %s700
          %s704 = smul.addr %s703, 8
          %s705 = scalar_lea.hbm %s3, %s704
          %s706 = sshll.u32 %s696, 4
          %s707 = int_to_ptr.vmem [resolvable:$true] %s706
          %s708 = sshll.u32 %s705, 4
          %s709 = int_to_ptr.hbm [resolvable:$true] %s708
          %714 = dma.vmem_to_hbm [thread:$0]  %s707, 256, %s709, %s693, 128, 128, 8
        $region158: #{tpu_custom_call.1} parent=133 // pred_fallthru
          _
      $region134: #{tpu_custom_call.1} parent=5 // pred_fallthru
        _
      %p715 = scmp.le.s32.totalorder 2, %s12
      // Predicated region
      $region159: #{tpu_custom_call.1} parent=5 // pred_check
        %p716 = pneg %p715
      $region160: #{tpu_custom_call.1} parent=5 // pred_check_branch
        %718 = sbr.rel (%p716) target = $region162
      $region161: #{tpu_custom_call.1} parent=5 // pred_region
        %s719 = ssub.s32 %s12, 2
        // Predicated region
        $region163: #{tpu_custom_call.1} parent=161 // pred_check
          %p720 = pneg %p146
        $region164: #{tpu_custom_call.1} parent=161 // pred_check_branch
          %722 = sbr.rel (%p720) target = $region166
        $region165: #{tpu_custom_call.1} parent=161 // pred_region
          %s723 = sand.u32 %s131, 1
          %s724 = scalar_lea.sflag [#allocation9], %s723
          %s725 = sand.u32 %s131, 1
          %s726 = smul.addr %s725, 16
          %s727 = scalar_lea.vmem [#allocation8], %s726
          %729 = dma.done %s724, 256
        $region166: #{tpu_custom_call.1} parent=161 // pred_fallthru
          _
      $region162: #{tpu_custom_call.1} parent=5 // pred_fallthru
        _
    $region6: #{tpu_custom_call.1} parent=1 // loop_footer
      %s16 = sadd.s32 1, %s12
    $region7: #{tpu_custom_call.1} parent=1 // loop_footer_branch
      %11 = sbr.rel target = $region3
    $region8: #{tpu_custom_call.1} parent=1 // loop_exit
      _
    %730 = vsyncpa [#allocation9], 1
    %s731 = scalar_lea.sflag [#allocation9], 1
    %732 = vsyncpa %s731, 1

</llo_original>
